<compile_context>
chip_gen: v5e
topology: v5e:2x2
jax: 0.10.0
libtpu: 0.0.40
codegen_flags: <defaults>
</compile_context>

<pallas_src>
import math

import jax
import jax.numpy as jnp
from jax.experimental import pallas as pl
from jax.experimental.pallas import tpu as pltpu


def _elr_conv_gemm_kernel(wt_ref, pt_ref, b_ref, o_ref):
    # wt_ref: (Cout, K)   ELR-scaled weights, K = kH*kW*Cin (contraction dim)
    # pt_ref: (K, TM)     im2col patch columns for TM output pixels (lane axis)
    # b_ref:  (Cout, 1)   bias, broadcast along lanes
    # o_ref:  (Cout, TM)  lane-dense output slab
    acc = jnp.dot(wt_ref[...], pt_ref[...], preferred_element_type=jnp.float32)
    o_ref[...] = (acc + b_ref[...]).astype(o_ref.dtype)


def elr_conv2d(x_nchw, weight_ocik, bias, *, padding=0, stride=1, tile_m=128):
    """Equal-LR conv2d forward. x_nchw: (N,Cin,H,W); weight: (Cout,Cin,kH,kW)."""
    # TODO(synk): only stride=1, dilation=1, groups=1 is implemented (the
    # module's default Conv2d config); other settings are asserted out.
    assert stride == 1, "stride > 1 not implemented"

    N, Cin, H, W = x_nchw.shape
    Cout, Cin_w, kH, kW = weight_ocik.shape
    assert Cin_w == Cin

    OH = H + 2 * padding - kH + 1
    OW = W + 2 * padding - kW + 1
    assert OH > 0 and OW > 0

    K = kH * kW * Cin          # contraction length for the GEMM
    M = N * OH * OW            # total output pixels (lane axis)

    # Equal-learning-rate scaling: sqrt(2 / fanin), fanin = Cin * kH * kW.
    scale = math.sqrt(2.0 / (Cin * kH * kW))
    # W_T: (Cout, K), K ordered (kh, kw, cin) to match the im2col row order.
    w_t = jnp.transpose(weight_ocik * scale, (0, 2, 3, 1)).reshape(Cout, K)

    # Zero-pad spatially (stay in NCHW; no whole-image NHWC transpose needed).
    xp = jnp.pad(x_nchw,
                 ((0, 0), (0, 0), (padding, padding), (padding, padding)))

    # Transposed im2col: P_T has shape (K, M), rows ordered (kh, kw, cin),
    # columns flat over (n, oh, ow).  Built once in the wrapper so the kernel
    # is a single dense GEMM (no unaligned shifted-window slices in-kernel).
    taps = []
    for kh in range(kH):
        for kw in range(kW):
            t = xp[:, :, kh:kh + OH, kw:kw + OW]              # (N, Cin, OH, OW)
            taps.append(jnp.transpose(t, (1, 0, 2, 3)).reshape(Cin, M))
    p_t = jnp.concatenate(taps, axis=0)                        # (K, M)

    # Pad the pixel axis to a multiple of the lane tile (garbage columns are
    # computed and sliced off below).
    tm = tile_m
    m_pad = ((M + tm - 1) // tm) * tm
    if m_pad > M:
        p_t = jnp.pad(p_t, ((0, 0), (0, m_pad - M)))
    grid_m = m_pad // tm

    b2 = bias.reshape(Cout, 1).astype(jnp.float32)

    out_t = pl.pallas_call(
        _elr_conv_gemm_kernel,
        out_shape=jax.ShapeDtypeStruct((Cout, m_pad), x_nchw.dtype),
        grid_spec=pltpu.PrefetchScalarGridSpec(
            num_scalar_prefetch=0,
            grid=(grid_m,),
            in_specs=[
                # Constant index_map -> weight/bias stay resident in VMEM.
                pl.BlockSpec((Cout, K), lambda i: (0, 0)),
                pl.BlockSpec((K, tm), lambda i: (0, i)),
                pl.BlockSpec((Cout, 1), lambda i: (0, 0)),
            ],
            out_specs=pl.BlockSpec((Cout, tm), lambda i: (0, i)),
        ),
        compiler_params=pltpu.CompilerParams(
            dimension_semantics=("parallel",)),
    )(w_t, p_t, b2)

    # (Cout, M) -> (N, Cout, OH, OW) to match the PyTorch NCHW convention.
    out = out_t[:, :M].reshape(Cout, N, OH, OW)
    return jnp.transpose(out, (1, 0, 2, 3))


if __name__ == "__main__":
    # ELRConv2d(in_channels=4, out_channels=8, kernel_size=3, padding=1)
    N, Cin, H, W = 2, 4, 16, 16
    Cout, kH, kW = 8, 3, 3
    padding = 1

    key = jax.random.PRNGKey(0)
    kx, kw = jax.random.split(key)
    x = jax.random.normal(kx, (N, Cin, H, W), dtype=jnp.float32)
    # conv.weight.data.normal_()  -> standard normal; conv.bias.data.zero_()
    weight = jax.random.normal(kw, (Cout, Cin, kH, kW), dtype=jnp.float32)
    bias = jnp.zeros((Cout,), dtype=jnp.float32)

    y = elr_conv2d(x, weight, bias, padding=padding)
    jax.block_until_ready(y)

    # Cross-check against XLA's reference convolution (same ELR scaling).
    scale = math.sqrt(2.0 / (Cin * kH * kW))
    y_ref = jax.lax.conv_general_dilated(
        x, weight * scale,
        window_strides=(1, 1),
        padding=((padding, padding), (padding, padding)),
        dimension_numbers=("NCHW", "OIHW", "NCHW"),
    ) + bias[None, :, None, None]
    assert y.shape == (N, Cout, H, W)
    assert jnp.allclose(y, y_ref, atol=1e-4, rtol=1e-4), "mismatch vs reference"

    print("KERNEL_OK")
</pallas_src>

<mosaic_0001>
module attributes {stable_mosaic.version = 11 : i64} {
  func.func @_elr_conv_gemm_kernel(%arg0: i32, %arg1: memref<8x36xf32, #tpu.memory_space<vmem>>, %arg2: memref<36x128xf32, #tpu.memory_space<vmem>>, %arg3: memref<8x1xf32, #tpu.memory_space<vmem>>, %arg4: memref<8x128xf32, #tpu.memory_space<vmem>>) attributes {dimension_semantics = [#tpu.dimension_semantics<parallel>], iteration_bounds = array<i64: 4>, scalar_prefetch = 0 : i64, scratch_operands = 0 : i64, tpu.core_type = #tpu.core_type<tc>, window_params = [{pipeline_mode = #tpu.pipeline_mode<synchronous>, transform_indices = @transform_0, window_bounds = array<i64: 8, 36>}, {transform_indices = @transform_1, window_bounds = array<i64: 36, 128>}, {pipeline_mode = #tpu.pipeline_mode<synchronous>, transform_indices = @transform_2, window_bounds = array<i64: 8, 1>}, {transform_indices = @transform_3, window_bounds = array<i64: 8, 128>}]} {
    %c0 = arith.constant 0 : index
    %c0_0 = arith.constant 0 : index
    %0 = vector.load %arg1[%c0, %c0_0] : memref<8x36xf32, #tpu.memory_space<vmem>>, vector<8x36xf32>
    %c0_1 = arith.constant 0 : index
    %c0_2 = arith.constant 0 : index
    %1 = vector.load %arg2[%c0_1, %c0_2] : memref<36x128xf32, #tpu.memory_space<vmem>>, vector<36x128xf32>
    %cst = arith.constant dense<0.000000e+00> : vector<8x128xf32>
    %2 = tpu.matmul %0, %1, %cst {dimension_numbers = #tpu.dot_dimension_numbers<[1], [0], [0], [1], [0, 0, 1, 1], [], []>} : vector<8x36xf32>, vector<36x128xf32>, vector<8x128xf32> -> vector<8x128xf32>
    %c0_3 = arith.constant 0 : index
    %c0_4 = arith.constant 0 : index
    %3 = vector.load %arg3[%c0_3, %c0_4] : memref<8x1xf32, #tpu.memory_space<vmem>>, vector<8x1xf32>
    %4 = vector.broadcast %3 : vector<8x1xf32> to vector<8x128xf32>
    %5 = arith.addf %2, %4 : vector<8x128xf32>
    %c0_5 = arith.constant 0 : index
    %c0_6 = arith.constant 0 : index
    %6 = vector.load %arg4[%c0_5, %c0_6] : memref<8x128xf32, #tpu.memory_space<vmem>>, vector<8x128xf32>
    tpu.vector_store %arg4[%c0_5, %c0_6], %5 {strides = array<i32>} : memref<8x128xf32, #tpu.memory_space<vmem>>, vector<8x128xf32>,
    return
  }
  func.func @transform_0(%arg0: i32) -> (i32, i32) {
    %c0_i32 = arith.constant 0 : i32
    %c0_i32_0 = arith.constant 0 : i32
    %c0_i32_1 = arith.constant 0 : i32
    return %c0_i32, %c0_i32_0 : i32, i32
  }
  func.func @transform_1(%arg0: i32) -> (i32, i32) {
    %c0_i32 = arith.constant 0 : i32
    %c0_i32_0 = arith.constant 0 : i32
    return %c0_i32, %arg0 : i32, i32
  }
  func.func @transform_2(%arg0: i32) -> (i32, i32) {
    %c0_i32 = arith.constant 0 : i32
    %c0_i32_0 = arith.constant 0 : i32
    %c0_i32_1 = arith.constant 0 : i32
    return %c0_i32, %c0_i32_0 : i32, i32
  }
  func.func @transform_3(%arg0: i32) -> (i32, i32) {
    %c0_i32 = arith.constant 0 : i32
    %c0_i32_0 = arith.constant 0 : i32
    return %c0_i32, %arg0 : i32, i32
  }
}

</mosaic_0001>

<llo_original>
// kernel: tpu_custom_call.1
$region0: #{tpu_custom_call.1}
  #allocation0 [shape = 'u32[]', space=smem, size = 0x4, offset = 0x4, fixed_abs, tag = 'smem constant byte address 0x4 - core index']
  #allocation1 [shape = 'u32[72,128]{1,0:T(1,128)}', space=vmem, size = 0x9000, scoped, tag = 'internal scratch']
  %s0 = inlined_call_operand.vmem [shape: f32[8,36], index: 0, kind: input, shape index: {}]
  %s1 = inlined_call_operand.hbm [shape: f32[36,512], index: 1, kind: input, shape index: {}]
  %s2 = inlined_call_operand.vmem [shape: f32[8,1], index: 2, kind: input, shape index: {}]
  %s3 = inlined_call_operand.hbm [shape: f32[8,512], index: 3, kind: output, shape index: {}]
  %s4 = sld [smem:[#allocation0]]
  $region49: #{tpu_custom_call.1} parent=0
    _
  %s6 = ssub.s32 1, %s4
  %s7 = scalar_select 0, %s6, %s4
  $region1: #{tpu_custom_call.1} parent=0
    #allocation2 [shape = 'u8[40960]{0}', space=vmem, size = 0xa000, scoped, tag = 'input window, operand 1']
    #allocation3 [shape = 's32[2]{0}', space=sflag, size = 0x8, scoped, tag = 'scoped memory for tpu_custom_call.1']
    #allocation4 [shape = 's32[2]{0}', space=sflag, size = 0x8, scoped, tag = 'scoped memory for tpu_custom_call.1']
    #allocation5 [shape = 'u8[8192]{0}', space=vmem, size = 0x2000, scoped, tag = 'output window, operand 0']
    %8 = vsyncpa [#allocation3], 0
    %s9 = scalar_lea.sflag [#allocation3], 1
    %10 = vsyncpa %s9, 0
    %11 = vsyncpa [#allocation4], 0
    %s12 = scalar_lea.sflag [#allocation4], 1
    %13 = vsyncpa %s12, 0
    loop: start=0, step=1, limit=6
    $region2: #{tpu_custom_call.1} parent=1 // loop_pre_header
      _
    $region3: #{tpu_custom_call.1} parent=1 // loop_header
      %s15 = sphi 0, %s19
      %p16 = scmp.ge.s32.totalorder %s15, 6
      %s23 = sphi 0, %s23
      %s25 = sphi 0, %s23
      %s26 = sphi 0, %s25
      %s40 = sphi 0, %s26
      %s46 = sphi 0, %s48
      %s49 = sphi 0, %s46
      %s50 = sphi 0, %s49
      %s66 = sphi 0, %s50
      %s70 = sphi 0, %s70
      %s72 = sphi 0, %s70
      %s73 = sphi 0, %s72
      %s87 = sphi 0, %s73
      %s93 = sphi 0, %s95
      %s96 = sphi 0, %s93
      %s97 = sphi 0, %s96
      %s113 = sphi 0, %s97
    $region4: #{tpu_custom_call.1} parent=1 // loop_header_branch
      %18 = sbr.rel (%p16) target = $region8
    $region5: #{tpu_custom_call.1} parent=1 // loop_body
      %s20 = ssub.s32 %s15, 1
      %s21 = ssub.s32 %s15, 2
      %s22 = sadd.s32 %s15, 1
      %s24 = sadd.s32 %s23, 1
      %p27 = scmp.eq.s32.totalorder %s15, 3
      %p28 = scmp.ne.s32.totalorder %s23, %s25
      %p29 = scmp.eq.s32.totalorder %s15, 0
      %p30 = por %p28, %p29
      %p31 = scmp.ne.s32.totalorder %s23, %s25
      %p32 = scmp.eq.s32.totalorder %s20, 3
      %p33 = por %p31, %p32
      %p34 = scmp.ne.s32.totalorder %s25, %s26
      %p35 = scmp.eq.s32.totalorder %s20, 0
      %p36 = por %p34, %p35
      %p37 = scmp.ne.s32.totalorder %s25, %s26
      %p38 = scmp.eq.s32.totalorder %s21, 3
      %p39 = por %p37, %p38
      %p41 = scmp.ne.s32.totalorder %s26, %s40
      %p42 = scmp.eq.s32.totalorder %s21, 0
      %p43 = por %p41, %p42
      %s44 = ssub.s32 %s15, %s22
      %p45 = scmp.eq.s32.totalorder %s44, 0
      %s47 = sadd.s32 %s46, 1
      %s48 = scalar_select %p45, %s46, %s47
      %p51 = pneg %p45
      %p52 = scmp.eq.s32.totalorder %s15, 3
      %p53 = por %p51, %p52
      %p54 = scmp.ne.s32.totalorder %s46, %s49
      %p55 = scmp.eq.s32.totalorder %s15, 0
      %p56 = por %p54, %p55
      %p57 = scmp.ne.s32.totalorder %s46, %s49
      %p58 = scmp.eq.s32.totalorder %s20, 3
      %p59 = por %p57, %p58
      %p60 = scmp.ne.s32.totalorder %s49, %s50
      %p61 = scmp.eq.s32.totalorder %s20, 0
      %p62 = por %p60, %p61
      %p63 = scmp.ne.s32.totalorder %s49, %s50
      %p64 = scmp.eq.s32.totalorder %s21, 3
      %p65 = por %p63, %p64
      %p67 = scmp.ne.s32.totalorder %s50, %s66
      %p68 = scmp.eq.s32.totalorder %s21, 0
      %p69 = por %p67, %p68
      %s71 = sadd.s32 %s70, 1
      %p74 = scmp.eq.s32.totalorder %s15, 3
      %p75 = scmp.ne.s32.totalorder %s70, %s72
      %p76 = scmp.eq.s32.totalorder %s15, 0
      %p77 = por %p75, %p76
      %p78 = scmp.ne.s32.totalorder %s70, %s72
      %p79 = scmp.eq.s32.totalorder %s20, 3
      %p80 = por %p78, %p79
      %p81 = scmp.ne.s32.totalorder %s72, %s73
      %p82 = scmp.eq.s32.totalorder %s20, 0
      %p83 = por %p81, %p82
      %p84 = scmp.ne.s32.totalorder %s72, %s73
      %p85 = scmp.eq.s32.totalorder %s21, 3
      %p86 = por %p84, %p85
      %p88 = scmp.ne.s32.totalorder %s73, %s87
      %p89 = scmp.eq.s32.totalorder %s21, 0
      %p90 = por %p88, %p89
      %s91 = ssub.s32 %s15, %s22
      %p92 = scmp.eq.s32.totalorder %s91, 0
      %s94 = sadd.s32 %s93, 1
      %s95 = scalar_select %p92, %s93, %s94
      %p98 = pneg %p92
      %p99 = scmp.eq.s32.totalorder %s15, 3
      %p100 = por %p98, %p99
      %p101 = scmp.ne.s32.totalorder %s93, %s96
      %p102 = scmp.eq.s32.totalorder %s15, 0
      %p103 = por %p101, %p102
      %p104 = scmp.ne.s32.totalorder %s93, %s96
      %p105 = scmp.eq.s32.totalorder %s20, 3
      %p106 = por %p104, %p105
      %p107 = scmp.ne.s32.totalorder %s96, %s97
      %p108 = scmp.eq.s32.totalorder %s20, 0
      %p109 = por %p107, %p108
      %p110 = scmp.ne.s32.totalorder %s96, %s97
      %p111 = scmp.eq.s32.totalorder %s21, 3
      %p112 = por %p110, %p111
      %p114 = scmp.ne.s32.totalorder %s97, %s113
      %p115 = scmp.eq.s32.totalorder %s21, 0
      %p116 = por %p114, %p115
      %p117 = scmp.le.s32.totalorder 1, %s15
      %p118 = scmp.lt.s32.totalorder %s15, 5
      %p119 = pnand %p117, %p118
      %p120 = pneg %p119
      // Predicated region
      $region9: #{tpu_custom_call.1} parent=5 // pred_check
        _
      $region10: #{tpu_custom_call.1} parent=5 // pred_check_branch
        %122 = sbr.rel (%p119) target = $region12
      $region11: #{tpu_custom_call.1} parent=5 // pred_region
        %s123 = ssub.s32 %s15, 1
        // Predicated region
        $region13: #{tpu_custom_call.1} parent=11 // pred_check
          %p124 = pneg %p36
        $region14: #{tpu_custom_call.1} parent=11 // pred_check_branch
          %126 = sbr.rel (%p124) target = $region16
        $region15: #{tpu_custom_call.1} parent=11 // pred_region
          _
        $region16: #{tpu_custom_call.1} parent=11 // pred_fallthru
          _
        // Predicated region
        $region17: #{tpu_custom_call.1} parent=11 // pred_check
          %p127 = pneg %p83
        $region18: #{tpu_custom_call.1} parent=11 // pred_check_branch
          %129 = sbr.rel (%p127) target = $region20
        $region19: #{tpu_custom_call.1} parent=11 // pred_region
          _
        $region20: #{tpu_custom_call.1} parent=11 // pred_fallthru
          _
      $region12: #{tpu_custom_call.1} parent=5 // pred_fallthru
        _
      %p130 = scmp.lt.s32.totalorder %s15, 4
      // Predicated region
      $region21: #{tpu_custom_call.1} parent=5 // pred_check
        %p131 = pneg %p130
      $region22: #{tpu_custom_call.1} parent=5 // pred_check_branch
        %133 = sbr.rel (%p131) target = $region24
      $region23: #{tpu_custom_call.1} parent=5 // pred_region
        // Predicated region
        $region25: #{tpu_custom_call.1} parent=23 // pred_check
          %p134 = pneg %p56
        $region26: #{tpu_custom_call.1} parent=23 // pred_check_branch
          %136 = sbr.rel (%p134) target = $region28
        $region27: #{tpu_custom_call.1} parent=23 // pred_region
          %s137 = sand.u32 %s46, 1
          %s138 = scalar_lea.sflag [#allocation3], %s137
          %s139 = sand.u32 %s46, 1
          %s140 = smul.addr %s139, 40
          %s141 = scalar_lea.vmem [#allocation2], %s140
          %143 = vsyncadd %s138, 0
          %s144 = smul.addr %s15, 8
          %s145 = scalar_lea.hbm %s1, %s144
          %s146 = sshll.u32 %s145, 4
          %s147 = int_to_ptr.hbm [resolvable:$true] %s146
          %s148 = sshll.u32 %s141, 4
          %s149 = int_to_ptr.vmem [resolvable:$true] %s148
          %154 = dma.hbm_to_vmem [thread:$0]  %s147, 640, %s149, %s138, 512, 128, 8
        $region28: #{tpu_custom_call.1} parent=23 // pred_fallthru
          _
      $region24: #{tpu_custom_call.1} parent=5 // pred_fallthru
        _
      %p155 = scmp.le.s32.totalorder 1, %s15
      %p156 = scmp.lt.s32.totalorder %s15, 5
      %p157 = pnand %p155, %p156
      %p158 = pneg %p157
      // Predicated region
      $region29: #{tpu_custom_call.1} parent=5 // pred_check
        _
      $region30: #{tpu_custom_call.1} parent=5 // pred_check_branch
        %160 = sbr.rel (%p157) target = $region32
      $region31: #{tpu_custom_call.1} parent=5 // pred_region
        %s161 = ssub.s32 %s15, 1
        %s162 = sand.u32 %s49, 1
        %s163 = scalar_lea.sflag [#allocation3], %s162
        %s164 = sand.u32 %s49, 1
        %s165 = smul.addr %s164, 40
        %s166 = scalar_lea.vmem [#allocation2], %s165
        // Predicated region
        $region33: #{tpu_custom_call.1} parent=31 // pred_check
          %p167 = pneg %p62
        $region34: #{tpu_custom_call.1} parent=31 // pred_check_branch
          %169 = sbr.rel (%p167) target = $region36
        $region35: #{tpu_custom_call.1} parent=31 // pred_region
          %171 = dma.done %s163, 640
        $region36: #{tpu_custom_call.1} parent=31 // pred_fallthru
          _
        %p172 = pneg %p36
        %p173 = pneg %p33
        %s174 = sand.u32 %s49, 1
        %s175 = scalar_lea.sflag [#allocation3], %s174
        %s176 = sand.u32 %s49, 1
        %s177 = smul.addr %s176, 40
        %s178 = scalar_lea.vmem [#allocation2], %s177
        %p179 = pneg %p62
        %p180 = pneg %p59
        %p181 = pneg %p83
        %p182 = pneg %p80
        %p183 = pneg %p109
        %p184 = pneg %p106
        %s185 = sand.u32 %s96, 1
        %s186 = scalar_lea.sflag [#allocation4], %s185
        %s187 = sand.u32 %s96, 1
        %s188 = smul.addr %s187, 8
        %s189 = scalar_lea.vmem [#allocation5], %s188
        %v190 = vld [vmem:[%s0] sm:$0xff]
        %v191 = vld [vmem:[%s166] sm:$0xff]
        %v192 = vld [vmem:[%s166 + $0x8] sm:$0xff]
        %v193 = vld [vmem:[%s166 + $0x10] sm:$0xff]
        %v194 = vld [vmem:[%s166 + $0x18] sm:$0xff]
        %v195 = vld [vmem:[%s166 + $0x20] sm:$0xf]
        %v196 = vld [vmem:[%s2] sm:$0xff]
        %198 = vset.pattern.permute.xlu0 0
        %199 = vperm.xlu0 %198, %v196
        %v200 = vpop.permute.xlu0 %199
        %vm202 = vcmask 293888
        %v204 = vsel %vm202, %v190, 0
        %vm206 = vcmask 1043456
        %v208 = vsel %vm206, %v195, 0
        %210 = vmatpush.msra.mxu0 0.0
        %211 = vmatpush.msra.mxu0 0.0
        %212 = vmatpush.msra.mxu0 0.0
        %213 = vmatpush.msra.mxu0 0.0
        %214 = vmatpush.msra.mxu0 0.0
        %215 = vmatpush.msra.mxu0 0.0
        %216 = vmatpush.msra.mxu0 0.0
        %217 = vmatpush.msra.mxu0 0.0
        %218 = vmatpush.msra.mxu0 0.0
        %219 = vmatpush.msra.mxu0 0.0
        %220 = vmatpush.msra.mxu0 0.0
        %221 = vmatpush.msra.mxu0 %v208
        %222 = vmatpush.msra.mxu0 %v194
        %223 = vmatpush.msra.mxu0 %v193
        %224 = vmatpush.msra.mxu0 %v192
        %225 = vmatpush.msra.mxu0 %v191
        %226 = vmatmul.f32.gmra.mxu0 %v204
        %v227 = vpop.f32.mrf.mxu0
        %v228 = vadd.f32 %v200, %v227
        %229 = vdwg.mxu0
        %230 = vst [vmem:[%s189] sm:$0xff] %v228
        %s231 = sand.u32 %s96, 1
        %s232 = scalar_lea.sflag [#allocation4], %s231
        %s233 = sand.u32 %s96, 1
        %s234 = smul.addr %s233, 8
        %s235 = scalar_lea.vmem [#allocation5], %s234
        // Predicated region
        $region37: #{tpu_custom_call.1} parent=31 // pred_check
          %p236 = pneg %p106
        $region38: #{tpu_custom_call.1} parent=31 // pred_check_branch
          %238 = sbr.rel (%p236) target = $region40
        $region39: #{tpu_custom_call.1} parent=31 // pred_region
          %240 = vsyncadd %s232, 0
          %s241 = smul.addr %s20, 8
          %s242 = scalar_lea.hbm %s3, %s241
          %s244 = sshll.u32 %s235, 4
          %s245 = int_to_ptr.vmem [resolvable:$true] %s244
          %s246 = sshll.u32 %s242, 4
          %s247 = int_to_ptr.hbm [resolvable:$true] %s246
          %249 = dma.vmem_to_hbm [thread:$0]  %s245, 128, %s247, %s232
        $region40: #{tpu_custom_call.1} parent=31 // pred_fallthru
          _
      $region32: #{tpu_custom_call.1} parent=5 // pred_fallthru
        _
      %p250 = scmp.le.s32.totalorder 2, %s15
      // Predicated region
      $region41: #{tpu_custom_call.1} parent=5 // pred_check
        %p251 = pneg %p250
      $region42: #{tpu_custom_call.1} parent=5 // pred_check_branch
        %253 = sbr.rel (%p251) target = $region44
      $region43: #{tpu_custom_call.1} parent=5 // pred_region
        %s254 = ssub.s32 %s15, 2
        // Predicated region
        $region45: #{tpu_custom_call.1} parent=43 // pred_check
          %p255 = pneg %p112
        $region46: #{tpu_custom_call.1} parent=43 // pred_check_branch
          %257 = sbr.rel (%p255) target = $region48
        $region47: #{tpu_custom_call.1} parent=43 // pred_region
          %s258 = sand.u32 %s97, 1
          %s259 = scalar_lea.sflag [#allocation4], %s258
          %s260 = sand.u32 %s97, 1
          %s261 = smul.addr %s260, 8
          %s262 = scalar_lea.vmem [#allocation5], %s261
          %264 = dma.done %s259, 128
        $region48: #{tpu_custom_call.1} parent=43 // pred_fallthru
          _
      $region44: #{tpu_custom_call.1} parent=5 // pred_fallthru
        _
    $region6: #{tpu_custom_call.1} parent=1 // loop_footer
      %s19 = sadd.s32 1, %s15
    $region7: #{tpu_custom_call.1} parent=1 // loop_footer_branch
      %14 = sbr.rel target = $region3
    $region8: #{tpu_custom_call.1} parent=1 // loop_exit
      _
    %265 = vsyncpa [#allocation3], 1
    %s266 = scalar_lea.sflag [#allocation3], 1
    %267 = vsyncpa %s266, 1
    %268 = vsyncpa [#allocation4], 1
    %s269 = scalar_lea.sflag [#allocation4], 1
    %270 = vsyncpa %s269, 1

</llo_original>
